<compile_context>
chip_gen: v6e
topology: v6e:2x2x1
jax: 0.10.0
libtpu: 0.0.40
codegen_flags: <defaults>
</compile_context>

<pallas_src>
import functools
import math

import jax
import jax.numpy as jnp
from jax.experimental import pallas as pl
from jax.experimental.pallas import tpu as pltpu


# ----------------------------------------------------------------------------
# Glue: extrinsics/intrinsics -> pose encoding (plain JAX, GT preprocessing)
# ----------------------------------------------------------------------------
def _sqrt_positive_part(x):
    return jnp.sqrt(jnp.maximum(x, 0.0))


def mat_to_quat(matrix):
    """Rotation matrices (..., 3, 3) -> quaternions (..., 4), scalar-last (xyzw)."""
    m00, m01, m02 = matrix[..., 0, 0], matrix[..., 0, 1], matrix[..., 0, 2]
    m10, m11, m12 = matrix[..., 1, 0], matrix[..., 1, 1], matrix[..., 1, 2]
    m20, m21, m22 = matrix[..., 2, 0], matrix[..., 2, 1], matrix[..., 2, 2]

    q_abs = _sqrt_positive_part(
        jnp.stack(
            [
                1.0 + m00 + m11 + m22,
                1.0 + m00 - m11 - m22,
                1.0 - m00 + m11 - m22,
                1.0 - m00 - m11 + m22,
            ],
            axis=-1,
        )
    )
    quat_by_rijk = jnp.stack(
        [
            jnp.stack([q_abs[..., 0] ** 2, m21 - m12, m02 - m20, m10 - m01], axis=-1),
            jnp.stack([m21 - m12, q_abs[..., 1] ** 2, m10 + m01, m02 + m20], axis=-1),
            jnp.stack([m02 - m20, m10 + m01, q_abs[..., 2] ** 2, m12 + m21], axis=-1),
            jnp.stack([m10 - m01, m20 + m02, m21 + m12, q_abs[..., 3] ** 2], axis=-1),
        ],
        axis=-2,
    )
    flr = 0.1
    quat_candidates = quat_by_rijk / (2.0 * jnp.maximum(q_abs[..., None], flr))
    idx = jnp.argmax(q_abs, axis=-1)
    quat = jnp.take_along_axis(quat_candidates, idx[..., None, None], axis=-2)[..., 0, :]
    # wxyz -> xyzw and standardize (non-negative last/real component)
    quat = quat[..., jnp.array([1, 2, 3, 0])]
    quat = jnp.where(quat[..., 3:4] < 0, -quat, quat)
    return quat


def extri_intri_to_pose_encoding(extrinsics, intrinsics, image_size_hw=None,
                                 pose_encoding_type="absT_quaR_FoV"):
    if pose_encoding_type != "absT_quaR_FoV":
        raise NotImplementedError
    R = extrinsics[:, :, :3, :3]
    T = extrinsics[:, :, :3, 3]
    quat = mat_to_quat(R)
    fov_h = 2.0 * jnp.arctan(0.5 / intrinsics[..., 1, 1])
    fov_w = 2.0 * jnp.arctan(0.5 / intrinsics[..., 0, 0])
    pose_encoding = jnp.concatenate(
        [T, quat, fov_h[..., None], fov_w[..., None]], axis=-1
    ).astype(jnp.float32)
    return pose_encoding


# ----------------------------------------------------------------------------
# Pallas kernels: per-(prediction, channel) raw huber sums, lane-dense over N
# ----------------------------------------------------------------------------
def _huber_body(pred, gt, delta):
    """pred (P,9,T) f32, gt (9,T) f32 -> elementwise huber with nan->0, clip."""
    diff = pred - gt[None, :, :]
    abs_diff = jnp.abs(diff)
    # Branch-free huber: q = min(|d|, delta); h = 0.5*q^2 + delta*(|d| - q)
    q = jnp.minimum(abs_diff, delta)
    h = 0.5 * q * q + delta * (abs_diff - q)
    # nan_to_num(nan=0, posinf=0, neginf=0) then clamp to [-100, 100]
    h = jnp.where(jnp.isfinite(h), h, 0.0)
    return jnp.clip(h, -100.0, 100.0)


def _huber_single_kernel(pred_ref, gt_ref, out_ref, *, delta):
    # pred_ref: (P, 9, N)  gt_ref: (9, N)  out_ref: (P, 9)
    pred = pred_ref[...].astype(jnp.float32)
    gt = gt_ref[...].astype(jnp.float32)
    h = _huber_body(pred, gt, delta)
    out_ref[...] = jnp.sum(h, axis=-1)          # direct write, no accumulator RMW


def _huber_tiled_kernel(pred_ref, gt_ref, out_ref, *, delta, n_total, n_tile,
                        tiles_per_slice):
    # pred_ref: (P, 9, n_tile)  gt_ref: (9, n_tile)  out_ref: (1, P, 9) resident
    c = pl.program_id(0)          # parallel slice (TensorCore) index
    t = pl.program_id(1)          # reduction step within slice

    @pl.when(t == 0)
    def _():
        out_ref[...] = jnp.zeros_like(out_ref)

    pred = pred_ref[...].astype(jnp.float32)
    gt = gt_ref[...].astype(jnp.float32)
    h = _huber_body(pred, gt, delta)

    # Mask the ragged N tail (and fully-out-of-range clamped tiles): data beyond
    # N is undefined (generally finite), so it MUST be zeroed before the sum.
    start = (c * tiles_per_slice + t) * n_tile
    lane = jax.lax.broadcasted_iota(jnp.int32, h.shape, dimension=2)
    h = jnp.where(start + lane < n_total, h, 0.0)

    out_ref[...] += jnp.sum(h, axis=-1)[None]


def _vmem_limit_bytes():
    """Scoped VMEM limit with ~25% headroom (<=48 MiB on v7x, 64 MiB v5e/v6e)."""
    cap = 128 << 20
    try:
        info = pltpu.get_tpu_info()
        cap = int(getattr(info, "vmem_capacity_bytes", cap))
    except Exception:
        pass
    return int(min(64 << 20, (cap * 3) // 4))


def _pick_n_tile(P, pred_dtype, gt_dtype, vmem_limit):
    """Largest lane tile whose double-buffered inputs use ~half the VMEM limit."""
    pred_item = jnp.dtype(pred_dtype).itemsize
    gt_item = jnp.dtype(gt_dtype).itemsize
    # 9 channels pad to 16 sublanes; inputs are double-buffered by the pipeline.
    bytes_per_lane = 2 * 16 * (P * pred_item + gt_item)
    budget = vmem_limit // 2
    n_tile = budget // max(bytes_per_lane, 1)
    n_tile = (n_tile // 128) * 128
    return int(max(512, min(32768, n_tile)))


def huber_channel_sums(preds_t, gt_t, *, delta=1.0, force_n_tile=None):
    """preds_t: (P, 9, N) any float dtype, gt_t: (9, N) -> (P, 9) f32 huber sums.

    N sits on the lane axis.  Small N runs as a single block (no accumulator);
    large N is tiled (no padding: cdiv grid + in-kernel tail mask) with a
    leading 'parallel' axis so both v7x TensorCores stream half the tiles.
    """
    P, C, N = preds_t.shape
    assert C == 9 and gt_t.shape == (C, N)

    vmem_limit = _vmem_limit_bytes()
    n_tile = (int(force_n_tile) if force_n_tile is not None
              else _pick_n_tile(P, preds_t.dtype, gt_t.dtype, vmem_limit))

    cost = pl.CostEstimate(
        flops=12 * P * C * N,
        transcendentals=0,
        bytes_accessed=(preds_t.size * jnp.dtype(preds_t.dtype).itemsize
                        + gt_t.size * jnp.dtype(gt_t.dtype).itemsize
                        + P * C * 4),
    )

    if N <= n_tile:
        # --- single-block fast path (the common case: N = B*S is small) ---
        kernel = functools.partial(_huber_single_kernel, delta=float(delta))
        return pl.pallas_call(
            kernel,
            out_shape=jax.ShapeDtypeStruct((P, C), jnp.float32),
            grid=(1,),
            in_specs=[
                pl.BlockSpec((P, C, N), lambda i: (0, 0, 0)),
                pl.BlockSpec((C, N), lambda i: (0, 0)),
            ],
            out_specs=pl.BlockSpec((P, C), lambda i: (0, 0)),
            compiler_params=pltpu.CompilerParams(
                dimension_semantics=("arbitrary",),
                vmem_limit_bytes=vmem_limit,
            ),
            cost_estimate=cost,
        )(preds_t, gt_t)

    # --- tiled path: no padding, in-kernel tail mask, 2-way core parallelism ---
    num_tiles = -(-N // n_tile)
    num_slices = 2 if num_tiles >= 2 else 1
    tiles_per_slice = -(-num_tiles // num_slices)

    def tile_idx(c, t):
        # Clamp: a slice may own a phantom trailing tile (odd tile count); its
        # contribution is fully masked off inside the kernel.
        return jnp.minimum(c * tiles_per_slice + t, num_tiles - 1)

    kernel = functools.partial(
        _huber_tiled_kernel, delta=float(delta), n_total=N, n_tile=n_tile,
        tiles_per_slice=tiles_per_slice)

    partial = pl.pallas_call(
        kernel,
        out_shape=jax.ShapeDtypeStruct((num_slices, P, C), jnp.float32),
        grid=(num_slices, tiles_per_slice),
        in_specs=[
            pl.BlockSpec((P, C, n_tile), lambda c, t: (0, 0, tile_idx(c, t))),
            pl.BlockSpec((C, n_tile), lambda c, t: (0, tile_idx(c, t))),
        ],
        out_specs=pl.BlockSpec((1, P, C), lambda c, t: (c, 0, 0)),
        compiler_params=pltpu.CompilerParams(
            dimension_semantics=("parallel", "arbitrary"),
            vmem_limit_bytes=vmem_limit,
        ),
        cost_estimate=cost,
    )(preds_t, gt_t)
    return jnp.sum(partial, axis=0)


# ----------------------------------------------------------------------------
# Module-equivalent wrapper
# ----------------------------------------------------------------------------
class HuberLoss:
    def __init__(self, alpha=1.0, delta=1.0, gamma=0.6,
                 weight_T=1.0, weight_R=1.0, weight_fl=0.5):
        self.alpha = alpha
        self.delta = delta
        self.gamma = gamma
        self.weight_T = weight_T
        self.weight_R = weight_R
        self.weight_fl = weight_fl

    def __call__(self, pred_pose_enc_list, batch):
        context_extrinsics = batch["context"]["extrinsics"]    # (B, S, 3, 4)
        context_intrinsics = batch["context"]["intrinsics"]    # (B, S, 3, 3)
        image_size_hw = batch["context"]["image"].shape[-2:]
        gt_pose_enc = extri_intri_to_pose_encoding(
            context_extrinsics, context_intrinsics, image_size_hw
        )                                                       # (B, S, 9)

        num_predictions = len(pred_pose_enc_list)
        B, S, C = gt_pose_enc.shape
        N = B * S

        # Lane-dense layout: channels on sublanes, N on lanes.  Predictions keep
        # their NATIVE dtype (bf16 halves DMA traffic); the kernel upcasts per
        # tile.  The stack must copy anyway, so the transpose fuses into it.
        preds = jnp.stack(pred_pose_enc_list, axis=0).reshape(num_predictions, N, C)
        preds_t = jnp.transpose(preds, (0, 2, 1))               # (P, 9, N) native dtype
        gt_t = jnp.transpose(
            gt_pose_enc.reshape(N, C).astype(jnp.float32), (1, 0))  # (9, N) f32

        # (P, 9) raw per-channel huber sums from the Pallas kernel.
        sums = huber_channel_sums(preds_t, gt_t, delta=self.delta)

        # Group means use the *global* N (denominators independent of tiling).
        n = jnp.float32(N)
        mean_T = jnp.sum(sums[:, 0:3], axis=1) / (n * 3.0)      # (P,)
        mean_R = jnp.sum(sums[:, 3:7], axis=1) / (n * 4.0)
        mean_fl = jnp.sum(sums[:, 7:9], axis=1) / (n * 2.0)

        weights = jnp.array(
            [self.gamma ** (num_predictions - i - 1) for i in range(num_predictions)],
            dtype=jnp.float32,
        )
        loss_T = jnp.sum(weights * mean_T) / num_predictions
        loss_R = jnp.sum(weights * mean_R) / num_predictions
        loss_fl = jnp.sum(weights * mean_fl) / num_predictions
        loss_camera = (loss_T * self.weight_T
                       + loss_R * self.weight_R
                       + loss_fl * self.weight_fl)
        return {
            "loss_camera": loss_camera,
            "loss_T": loss_T,
            "loss_R": loss_R,
            "loss_fl": loss_fl,
        }


# ----------------------------------------------------------------------------
# Pure-JAX references for sanity checks
# ----------------------------------------------------------------------------
def _reference_loss(pred_pose_enc_list, gt_enc, *, delta, gamma, wT, wR, wfl):
    def huber(x, y):
        d = x - y
        a = jnp.abs(d)
        flag = (a <= delta).astype(d.dtype)
        return flag * 0.5 * d * d + (1.0 - flag) * delta * (a - 0.5 * delta)

    P = len(pred_pose_enc_list)
    loss_T = loss_R = loss_fl = 0.0
    for i in range(P):
        w = gamma ** (P - i - 1)
        pe = pred_pose_enc_list[i].astype(jnp.float32)

        def proc(h):
            h = jnp.where(jnp.isfinite(h), h, 0.0)
            h = jnp.clip(h, -100.0, 100.0)
            return jnp.mean(h)

        loss_T += w * proc(huber(pe[..., :3], gt_enc[..., :3]))
        loss_R += w * proc(huber(pe[..., 3:7], gt_enc[..., 3:7]))
        loss_fl += w * proc(huber(pe[..., 7:], gt_enc[..., 7:]))
    loss_T /= P
    loss_R /= P
    loss_fl /= P
    return loss_T * wT + loss_R * wR + loss_fl * wfl


def _reference_channel_sums(preds_t, gt_t, delta=1.0):
    d = jnp.abs(preds_t.astype(jnp.float32) - gt_t.astype(jnp.float32)[None])
    q = jnp.minimum(d, delta)
    h = 0.5 * q * q + delta * (d - q)
    h = jnp.clip(jnp.where(jnp.isfinite(h), h, 0.0), -100.0, 100.0)
    return jnp.sum(h, axis=-1)


if __name__ == "__main__":
    key = jax.random.PRNGKey(0)
    k_rot, k_t, k_fx, k_fy, k_noise, k_big1, k_big2 = jax.random.split(key, 7)

    B, S = 2, 4           # batch, sequence
    P = 3                 # number of pose predictions
    H = W = 16            # image spatial size (shape plumbing only)

    # Random valid rotations via QR (det = +1)
    A = jax.random.normal(k_rot, (B, S, 3, 3), dtype=jnp.float32)
    Q, _ = jnp.linalg.qr(A)
    det_sign = jnp.sign(jnp.linalg.det(Q))
    Q = Q * det_sign[..., None, None]
    T = jax.random.normal(k_t, (B, S, 3, 1), dtype=jnp.float32)
    extrinsics = jnp.concatenate([Q, T], axis=-1)               # (B, S, 3, 4)

    fx = jax.random.uniform(k_fx, (B, S), minval=0.8, maxval=1.5)
    fy = jax.random.uniform(k_fy, (B, S), minval=0.8, maxval=1.5)
    intrinsics = jnp.zeros((B, S, 3, 3), dtype=jnp.float32)
    intrinsics = intrinsics.at[..., 0, 0].set(fx)
    intrinsics = intrinsics.at[..., 1, 1].set(fy)
    intrinsics = intrinsics.at[..., 0, 2].set(0.5)
    intrinsics = intrinsics.at[..., 1, 2].set(0.5)
    intrinsics = intrinsics.at[..., 2, 2].set(1.0)

    batch = {
        "context": {
            "extrinsics": extrinsics,
            "intrinsics": intrinsics,
            "image": jnp.zeros((B, S, 3, H, W), dtype=jnp.float32),
        }
    }

    gt_enc = extri_intri_to_pose_encoding(extrinsics, intrinsics, (H, W))
    noise = jax.random.normal(k_noise, (P, B, S, 9), dtype=jnp.float32)
    pred_pose_enc_list = [gt_enc + 0.1 * (i + 1) * noise[i] for i in range(P)]

    # --- end-to-end module check (single-block fast path) ---
    loss_mod = HuberLoss()
    out = loss_mod(pred_pose_enc_list, batch)
    jax.block_until_ready(out["loss_camera"])

    ref = _reference_loss(pred_pose_enc_list, gt_enc, delta=1.0, gamma=0.6,
                          wT=1.0, wR=1.0, wfl=0.5)
    assert jnp.allclose(out["loss_camera"], ref, rtol=1e-4, atol=1e-5), (
        out["loss_camera"], ref)

    # --- tiled / masked-tail / dual-slice path check (forced small tile) ---
    Nbig = 300            # ragged vs n_tile=128 -> 3 tiles over 2 parallel slices
    preds_big = jax.random.normal(k_big1, (2, 9, Nbig), dtype=jnp.float32)
    gt_big = jax.random.normal(k_big2, (9, Nbig), dtype=jnp.float32)
    sums_tiled = huber_channel_sums(preds_big, gt_big, delta=1.0, force_n_tile=128)
    jax.block_until_ready(sums_tiled)
    sums_ref = _reference_channel_sums(preds_big, gt_big, delta=1.0)
    assert jnp.allclose(sums_tiled, sums_ref, rtol=1e-5, atol=1e-3), (
        sums_tiled, sums_ref)

    print("KERNEL_OK")
</pallas_src>

<mosaic_0001>
module attributes {stable_mosaic.version = 11 : i64} {
  func.func @_huber_single_kernel(%arg0: i32, %arg1: memref<3x9x8xf32, #tpu.memory_space<vmem>>, %arg2: memref<9x8xf32, #tpu.memory_space<vmem>>, %arg3: memref<3x9xf32, #tpu.memory_space<vmem>>) attributes {dimension_semantics = [#tpu.dimension_semantics<arbitrary>], iteration_bounds = array<i64: 1>, scalar_prefetch = 0 : i64, scratch_operands = 0 : i64, tpu.core_type = #tpu.core_type<tc>, window_params = [{pipeline_mode = #tpu.pipeline_mode<synchronous>, transform_indices = @transform_0, window_bounds = array<i64: 3, 9, 8>}, {pipeline_mode = #tpu.pipeline_mode<synchronous>, transform_indices = @transform_1, window_bounds = array<i64: 9, 8>}, {pipeline_mode = #tpu.pipeline_mode<synchronous>, transform_indices = @transform_2, window_bounds = array<i64: 3, 9>}]} {
    %c0 = arith.constant 0 : index
    %c0_0 = arith.constant 0 : index
    %c0_1 = arith.constant 0 : index
    %0 = vector.load %arg1[%c0, %c0_0, %c0_1] : memref<3x9x8xf32, #tpu.memory_space<vmem>>, vector<3x9x8xf32>
    %c0_2 = arith.constant 0 : index
    %c0_3 = arith.constant 0 : index
    %1 = vector.load %arg2[%c0_2, %c0_3] : memref<9x8xf32, #tpu.memory_space<vmem>>, vector<9x8xf32>
    %2 = vector.shape_cast %1 : vector<9x8xf32> to vector<1x9x8xf32>
    %3 = vector.broadcast %2 : vector<1x9x8xf32> to vector<3x9x8xf32>
    %4 = arith.subf %0, %3 : vector<3x9x8xf32>
    %5 = math.absf %4 : vector<3x9x8xf32>
    %cst = arith.constant 1.000000e+00 : f32
    %6 = vector.broadcast %cst : f32 to vector<3x9x8xf32>
    %7 = arith.minimumf %5, %6 : vector<3x9x8xf32>
    %cst_4 = arith.constant 5.000000e-01 : f32
    %8 = vector.broadcast %cst_4 : f32 to vector<3x9x8xf32>
    %9 = arith.mulf %8, %7 : vector<3x9x8xf32>
    %10 = arith.mulf %9, %7 : vector<3x9x8xf32>
    %11 = arith.subf %5, %7 : vector<3x9x8xf32>
    %cst_5 = arith.constant 1.000000e+00 : f32
    %12 = vector.broadcast %cst_5 : f32 to vector<3x9x8xf32>
    %13 = arith.mulf %12, %11 : vector<3x9x8xf32>
    %14 = arith.addf %10, %13 : vector<3x9x8xf32>
    %15 = tpu.weird %14 : vector<3x9x8xf32> -> vector<3x9x8xi1>
    %cst_6 = arith.constant dense<true> : vector<3x9x8xi1>
    %16 = arith.xori %15, %cst_6 : vector<3x9x8xi1>
    %cst_7 = arith.constant 0.000000e+00 : f32
    %17 = vector.broadcast %cst_7 : f32 to vector<3x9x8xf32>
    %18 = arith.select %16, %14, %17 : vector<3x9x8xi1>, vector<3x9x8xf32>
    %cst_8 = arith.constant -1.000000e+02 : f32
    %cst_9 = arith.constant 1.000000e+02 : f32
    %19 = vector.broadcast %cst_8 : f32 to vector<3x9x8xf32>
    %20 = arith.maximumf %19, %18 : vector<3x9x8xf32>
    %21 = vector.broadcast %cst_9 : f32 to vector<3x9x8xf32>
    %22 = arith.minimumf %21, %20 : vector<3x9x8xf32>
    %cst_10 = arith.constant dense<0.000000e+00> : vector<3x9xf32>
    %23 = vector.multi_reduction <add>, %22, %cst_10 [2] : vector<3x9x8xf32> to vector<3x9xf32>
    %c0_11 = arith.constant 0 : index
    %c0_12 = arith.constant 0 : index
    %24 = vector.load %arg3[%c0_11, %c0_12] : memref<3x9xf32, #tpu.memory_space<vmem>>, vector<3x9xf32>
    tpu.vector_store %arg3[%c0_11, %c0_12], %23 {strides = array<i32>} : memref<3x9xf32, #tpu.memory_space<vmem>>, vector<3x9xf32>,
    return
  }
  func.func @transform_0(%arg0: i32) -> (i32, i32, i32) {
    %c0_i32 = arith.constant 0 : i32
    %c0_i32_0 = arith.constant 0 : i32
    %c0_i32_1 = arith.constant 0 : i32
    %c0_i32_2 = arith.constant 0 : i32
    return %c0_i32, %c0_i32_0, %c0_i32_1 : i32, i32, i32
  }
  func.func @transform_1(%arg0: i32) -> (i32, i32) {
    %c0_i32 = arith.constant 0 : i32
    %c0_i32_0 = arith.constant 0 : i32
    %c0_i32_1 = arith.constant 0 : i32
    return %c0_i32, %c0_i32_0 : i32, i32
  }
  func.func @transform_2(%arg0: i32) -> (i32, i32) {
    %c0_i32 = arith.constant 0 : i32
    %c0_i32_0 = arith.constant 0 : i32
    %c0_i32_1 = arith.constant 0 : i32
    return %c0_i32, %c0_i32_0 : i32, i32
  }
}

</mosaic_0001>

<llo_original>
// kernel: tpu_custom_call.1
$region0: #{tpu_custom_call.1}
  #allocation0 [shape = 'u32[]', space=smem, size = 0x4, offset = 0x4, fixed_abs, tag = 'smem constant byte address 0x4 - core index']
  #allocation1 [shape = 'u32[144,128]{1,0:T(1,128)}', space=vmem, size = 0x12000, scoped, tag = 'internal scratch']
  %s0 = inlined_call_operand.vmem [shape: f32[3,9,8], index: 0, kind: input, shape index: {}]
  %s1 = inlined_call_operand.vmem [shape: f32[9,8], index: 1, kind: input, shape index: {}]
  %s2 = inlined_call_operand.hbm [shape: f32[3,9], index: 2, kind: output, shape index: {}]
  %s3 = sld [smem:[#allocation0]]
  $region18: #{tpu_custom_call.1} parent=0
    _
  %s5 = ssub.s32 1, %s3
  %s6 = scalar_select 0, %s5, %s3
  $region1: #{tpu_custom_call.1} parent=0
    #allocation2 [shape = 'u8[2048]{0}', space=vmem, size = 0x800, scoped, tag = 'output window, operand 0, single buffered']
    #allocation3 [shape = 's32[1]{0}', space=sflag, size = 0x4, scoped, tag = 'scoped memory for tpu_custom_call.1']
    %7 = vsyncpa [#allocation3], 0
    // Predicated region
    $region2: #{tpu_custom_call.1} parent=1 // pred_check
      _
    $region3: #{tpu_custom_call.1} parent=1 // pred_check_branch
      %9 = sbr.rel (0) target = $region5
    $region4: #{tpu_custom_call.1} parent=1 // pred_region
      _
    $region5: #{tpu_custom_call.1} parent=1 // pred_fallthru
      _
    // Predicated region
    $region6: #{tpu_custom_call.1} parent=1 // pred_check
      _
    $region7: #{tpu_custom_call.1} parent=1 // pred_check_branch
      %11 = sbr.rel (0) target = $region9
    $region8: #{tpu_custom_call.1} parent=1 // pred_region
      _
    $region9: #{tpu_custom_call.1} parent=1 // pred_fallthru
      _
    %v12 = vld [vmem:[%s0] sm:$0xff]
    %v13 = vld [vmem:[%s0 + $0x8] sm:$0x1]
    %v14 = vld [vmem:[%s0 + $0x10] sm:$0xff]
    %v15 = vld [vmem:[%s0 + $0x18] sm:$0x1]
    %v16 = vld [vmem:[%s0 + $0x20] sm:$0xff]
    %v17 = vld [vmem:[%s0 + $0x28] sm:$0x1]
    %v18 = vld [vmem:[%s1] sm:$0xff]
    %v19 = vld [vmem:[%s1 + $0x8] sm:$0x1]
    %v20 = vsub.f32 %v12, %v18
    %v21 = vsub.f32 %v13, %v19
    %v22 = vsub.f32 %v14, %v18
    %v23 = vsub.f32 %v15, %v19
    %v24 = vsub.f32 %v16, %v18
    %v25 = vsub.f32 %v17, %v19
    %v26 = vand.u32 2147483647, %v20
    %v27 = vand.u32 2147483647, %v21
    %v28 = vand.u32 2147483647, %v22
    %v29 = vand.u32 2147483647, %v23
    %v30 = vand.u32 2147483647, %v24
    %v31 = vand.u32 2147483647, %v25
    %v32 = vmin.f32 %v26, 1.0
    %v33 = vmin.f32 %v27, 1.0
    %v34 = vmin.f32 %v28, 1.0
    %v35 = vmin.f32 %v29, 1.0
    %v36 = vmin.f32 %v30, 1.0
    %v37 = vmin.f32 %v31, 1.0
    %v38 = vmul.f32 %v32, 0.5
    %v39 = vmul.f32 %v33, 0.5
    %v40 = vmul.f32 %v34, 0.5
    %v41 = vmul.f32 %v35, 0.5
    %v42 = vmul.f32 %v36, 0.5
    %v43 = vmul.f32 %v37, 0.5
    %v44 = vmul.f32 %v38, %v32
    %v45 = vmul.f32 %v39, %v33
    %v46 = vmul.f32 %v40, %v34
    %v47 = vmul.f32 %v41, %v35
    %v48 = vmul.f32 %v42, %v36
    %v49 = vmul.f32 %v43, %v37
    %v50 = vsub.f32 %v26, %v32
    %v51 = vsub.f32 %v27, %v33
    %v52 = vsub.f32 %v28, %v34
    %v53 = vsub.f32 %v29, %v35
    %v54 = vsub.f32 %v30, %v36
    %v55 = vsub.f32 %v31, %v37
    %v56 = vadd.f32 %v44, %v50
    %v57 = vadd.f32 %v45, %v51
    %v58 = vadd.f32 %v46, %v52
    %v59 = vadd.f32 %v47, %v53
    %v60 = vadd.f32 %v48, %v54
    %v61 = vadd.f32 %v49, %v55
    %vm62 = vweird.f32 %v56
    %vm63 = vweird.f32 %v57
    %vm64 = vweird.f32 %v58
    %vm65 = vweird.f32 %v59
    %vm66 = vweird.f32 %v60
    %vm67 = vweird.f32 %v61
    %vm68 = vmxor %vm62, 1
    %vm69 = vmxor %vm63, 1
    %vm70 = vmxor %vm64, 1
    %vm71 = vmxor %vm65, 1
    %vm72 = vmxor %vm66, 1
    %vm73 = vmxor %vm67, 1
    %v74 = vsel %vm68, %v56, 0.0
    %v75 = vsel %vm69, %v57, 0.0
    %v76 = vsel %vm70, %v58, 0.0
    %v77 = vsel %vm71, %v59, 0.0
    %v78 = vsel %vm72, %v60, 0.0
    %v79 = vsel %vm73, %v61, 0.0
    %v80 = vmax.f32 %v74, -100.0
    %v81 = vmax.f32 %v75, -100.0
    %v82 = vmax.f32 %v76, -100.0
    %v83 = vmax.f32 %v77, -100.0
    %v84 = vmax.f32 %v78, -100.0
    %v85 = vmax.f32 %v79, -100.0
    %v86 = vmin.f32 %v80, 100.0
    %v87 = vmin.f32 %v81, 100.0
    %v88 = vmin.f32 %v82, 100.0
    %v89 = vmin.f32 %v83, 100.0
    %v90 = vmin.f32 %v84, 100.0
    %v91 = vmin.f32 %v85, 100.0
    %vm92 = vcmask 64512
    %v93 = vsel %vm92, %v86, 0.0
    %94 = vadd.xlane.f32.xlu0 %v93
    %v95 = vpop.xlane.xlu0 %94
    %vm96 = vcmask 57344
    %v97 = vsel %vm96, %v87, 0.0
    %98 = vadd.xlane.f32.xlu0 %v97
    %v99 = vpop.xlane.xlu0 %98
    %v100 = vsel %vm92, %v88, 0.0
    %101 = vadd.xlane.f32.xlu0 %v100
    %v102 = vpop.xlane.xlu0 %101
    %v103 = vsel %vm96, %v89, 0.0
    %104 = vadd.xlane.f32.xlu0 %v103
    %v105 = vpop.xlane.xlu0 %104
    %v106 = vsel %vm92, %v90, 0.0
    %107 = vadd.xlane.f32.xlu0 %v106
    %v108 = vpop.xlane.xlu0 %107
    %v109 = vsel %vm96, %v91, 0.0
    %110 = vadd.xlane.f32.xlu0 %v109
    %v111 = vpop.xlane.xlu0 %110
    %v118 = vlaneseq
    %v119 = vand.u32 %v118, 127
    %v120 = vlaneseq
    %v121 = vshrl.u32 %v120, 7
    %v122 = vsub.s32 %v119, %v121
    %v123 = vrot.slane %v95, %v122
    %v124 = vadd.s32 %v119, 4294967288
    %v125 = vlaneseq
    %v126 = vshrl.u32 %v125, 7
    %v127 = vsub.s32 %v124, %v126
    %v128 = vrot.slane %v99, %v127
    %vm129 = vcmask 130112
    %v130 = vsel %vm129, %v128, %v123
    %v131 = vlaneseq
    %v132 = vshrl.u32 %v131, 7
    %v133 = vsub.s32 %v119, %v132
    %v134 = vrot.slane %v102, %v133
    %v135 = vlaneseq
    %v136 = vshrl.u32 %v135, 7
    %v137 = vsub.s32 %v124, %v136
    %v138 = vrot.slane %v105, %v137
    %v139 = vsel %vm129, %v138, %v134
    %v140 = vlaneseq
    %v141 = vshrl.u32 %v140, 7
    %v142 = vsub.s32 %v119, %v141
    %v143 = vrot.slane %v108, %v142
    %v144 = vlaneseq
    %v145 = vshrl.u32 %v144, 7
    %v146 = vsub.s32 %v124, %v145
    %v147 = vrot.slane %v111, %v146
    %v148 = vsel %vm129, %v147, %v143
    %vm149 = vcmask 1041409
    %v150 = vsel %vm149, %v139, %v130
    %vm151 = vcmask 1042434
    %v152 = vsel %vm151, %v148, %v150
    %vm154 = vcmask 67584
    %155 = vst.msk [vmem:[#allocation2] sm:$0x7] %vm154, %v152
    // Predicated region
    $region10: #{tpu_custom_call.1} parent=1 // pred_check
      _
    $region11: #{tpu_custom_call.1} parent=1 // pred_check_branch
      %157 = sbr.rel (0) target = $region13
    $region12: #{tpu_custom_call.1} parent=1 // pred_region
      %s159 = ssub.s32 64, 64
      %160 = vsyncadd [#allocation3], %s159
      %s162 = sshll.u32 [#allocation2], 4
      %s163 = int_to_ptr.vmem [resolvable:$true] %s162
      %165 = dma.vmem_to_hbm [thread:$0]  %s163, 64, %s2, [#allocation3]
    $region13: #{tpu_custom_call.1} parent=1 // pred_fallthru
      _
    // Predicated region
    $region14: #{tpu_custom_call.1} parent=1 // pred_check
      _
    $region15: #{tpu_custom_call.1} parent=1 // pred_check_branch
      %167 = sbr.rel (0) target = $region17
    $region16: #{tpu_custom_call.1} parent=1 // pred_region
      %168 = dma.done [#allocation3], 64
    $region17: #{tpu_custom_call.1} parent=1 // pred_fallthru
      _
    %169 = vsyncpa [#allocation3], 1

</llo_original>
